<compile_context>
chip_gen: v6e
topology: v6e:2x2x1
jax: 0.10.0
libtpu: 0.0.40
codegen_flags: <defaults>
</compile_context>

<pallas_src>
import functools

import jax
import jax.numpy as jnp
import numpy as np
from jax.experimental import pallas as pl
from jax.experimental.pallas import tpu as pltpu


def _attn_pool_kernel(x_ref, w_ref, b_ref, starts_ref, ends_ref, o_ref,
                      s_scr, xt_scr):
    # x_ref      : (BB, D, N)  native channels-first layout (no host transpose)
    # w_ref      : (1, D)      conv1d weight row (kernel_size=1, out_channels=1)
    # b_ref      : (1,)        conv1d bias scalar, resident in SMEM
    # starts_ref : (TM, 1) i32 per-anchor window start (inclusive)
    # ends_ref   : (TM, 1) i32 per-anchor window end   (inclusive)
    # o_ref      : (BB, TM, D) output tile
    # s_scr      : (BB, 1, N)  per-batch score row scratch
    # xt_scr     : (BB, N, D)  per-batch transposed-x scratch
    BB, D, N = x_ref.shape
    TM = starts_ref.shape[0]

    # Hoisted per-batch work: score row + x transpose, computed once per batch
    # element (M-tile axis is innermost and marked "arbitrary").
    @pl.when(pl.program_id(1) == 0)
    def _():
        w = w_ref[...]                                            # (1, D)
        for b in range(BB):
            xb = x_ref[b]                                         # (D, N)
            # conv1d(k=1): lane-dense (1, D) @ (D, N) -> (1, N) score row (+ bias).
            s_scr[b] = jnp.dot(w, xb, preferred_element_type=jnp.float32) + b_ref[0]
            # One XLU transpose per batch element (not per M tile).
            xt_scr[b] = xb.T                                      # (N, D)

    # Rebuild the anchor mask in-kernel from (start, end): no (M, N) mask DMA.
    clip_idx = jax.lax.broadcasted_iota(jnp.int32, (TM, N), 1)
    in_win = (clip_idx >= starts_ref[...]) & (clip_idx <= ends_ref[...])  # (TM, N)

    for b in range(BB):
        s = s_scr[b]                                              # (1, N)
        # sim = s - mask  (mask = 0 inside window, 1e10 outside)
        sim = jnp.where(in_win, s, s - 1e10)                      # (TM, N)

        # Numerically stable softmax over clips (dim=2 in PyTorch).
        m = jnp.max(sim, axis=-1, keepdims=True)
        p = jnp.exp(sim - m)
        denom = jnp.sum(p, axis=-1, keepdims=True)
        scores = p * (1.0 / denom)          # exact reciprocal on (TM, 1): precise

        # bmm(scores, x^T): (TM, N) @ (N, D) -> (TM, D), no per-step transpose.
        out = jnp.dot(scores, xt_scr[b], preferred_element_type=jnp.float32)
        o_ref[b] = out.astype(o_ref.dtype)


def _pick_m_tile(m, max_tile=256):
    """Largest multiple-of-8 divisor of m that is <= max_tile (bounds VMEM use)."""
    if m <= max_tile:
        return m
    for t in range(max_tile - max_tile % 8, 7, -8):
        if m % t == 0:
            return t
    # TODO(synk): pad M to a multiple of 8 with a masked tail instead of falling
    # back to the full axis when M has no clean divisor (could OOM on v7x/v5e).
    return m


def _pick_batch_block(b, per_b_bytes, m_tiles, *, max_bytes=2 << 20, max_bb=8):
    """Largest divisor of b (<= max_bb) whose slab fits the byte budget while
    keeping at least 2 grid steps of parallel grain for megacore (v7x)."""
    best = 1
    for bb in range(1, min(b, max_bb) + 1):
        if b % bb:
            continue
        if bb * per_b_bytes > max_bytes:
            continue
        if bb > 1 and (b // bb) * m_tiles < 2:
            continue
        best = bb
    return best


@functools.partial(jax.jit, static_argnames=("max_m_tile",))
def self_attention_pooling(x, conv_w, conv_b, anchors, *, max_m_tile=256):
    """x: (B, D, N) f32; conv_w: (1, D, 1); conv_b: (1,); anchors: (M, 3) int32
    with rows [idx, start, end] (same data the PyTorch module builds its mask from)."""
    B, D, N = x.shape
    M = anchors.shape[0]

    w_row = conv_w.reshape(1, D)                       # conv1d weight as (1, D) row
    bias = conv_b.reshape(1).astype(jnp.float32)       # scalar bias -> SMEM
    starts = anchors[:, 1].astype(jnp.int32).reshape(M, 1)
    ends = anchors[:, 2].astype(jnp.int32).reshape(M, 1)

    TM = _pick_m_tile(M, max_m_tile)
    m_tiles = M // TM
    # Per-batch VMEM working set: x block + x^T scratch + score row + out tile.
    per_b_bytes = 4 * (2 * D * N + N + TM * D)
    BB = _pick_batch_block(B, per_b_bytes, m_tiles)
    grid = (B // BB, m_tiles)

    out = pl.pallas_call(
        _attn_pool_kernel,
        out_shape=jax.ShapeDtypeStruct((B, M, D), x.dtype),
        grid_spec=pltpu.PrefetchScalarGridSpec(
            num_scalar_prefetch=0,
            grid=grid,
            in_specs=[
                # x in native (B, D, N); block index constant over the M axis,
                # so each batch slab is DMA'd once.
                pl.BlockSpec((BB, D, N), lambda bi, mi: (bi, 0, 0)),
                # shared conv1d weight row
                pl.BlockSpec((1, D), lambda bi, mi: (0, 0)),
                # conv1d bias as an SMEM scalar
                pl.BlockSpec(memory_space=pltpu.MemorySpace.SMEM),
                # per-anchor window [start, end] columns (replace the dense mask)
                pl.BlockSpec((TM, 1), lambda bi, mi: (mi, 0)),
                pl.BlockSpec((TM, 1), lambda bi, mi: (mi, 0)),
            ],
            out_specs=pl.BlockSpec((BB, TM, D), lambda bi, mi: (bi, mi, 0)),
            scratch_shapes=[
                pltpu.VMEM((BB, 1, N), jnp.float32),   # hoisted score rows
                pltpu.VMEM((BB, N, D), jnp.float32),   # hoisted x^T
            ],
        ),
        compiler_params=pltpu.CompilerParams(
            # M axis carries the hoisted scratch -> must be sequential.
            dimension_semantics=("parallel", "arbitrary"),
        ),
    )(x, w_row, bias, starts, ends)
    return out


def build_mask(num_anchors, anchors, num_clips):
    """Replicates __init__: mask = 1e10 everywhere except [anchor[1], anchor[2]]."""
    mask = np.full((num_anchors, num_clips), 1e10, dtype=np.float32)
    for i, anchor in enumerate(np.asarray(anchors, dtype=np.int32)[:num_anchors]):
        mask[i, anchor[1]: anchor[2] + 1] = 0.0
    return jnp.asarray(mask)


def reference(x, conv_w, conv_b, mask):
    """Plain-JAX reference mirroring the PyTorch forward."""
    s = jnp.einsum("bdn,d->bn", x, conv_w.reshape(-1),
                   precision=jax.lax.Precision.HIGHEST) + conv_b.reshape(())
    sim = s[:, None, :] - mask[None, :, :]
    scores = jax.nn.softmax(sim, axis=2)
    return jnp.einsum("bmn,bdn->bmd", scores, x,
                      precision=jax.lax.Precision.HIGHEST)


if __name__ == "__main__":
    # Small, lane/sublane-aligned shapes consistent with the module.
    B = 2      # batch
    D = 128    # hidden_size (conv1d in_channels) -> lane-dense output stores
    N = 128    # num_clips
    M = 8      # num_anchors / num_proposals

    key = jax.random.PRNGKey(0)
    k_x, k_w, k_b, k_a = jax.random.split(key, 4)

    x = jax.random.normal(k_x, (B, D, N), dtype=jnp.float32)

    # Deterministic "anchors": (M, 3) with [idx, start, end].
    starts = jax.random.randint(k_a, (M,), 0, N - 2)
    ends = jnp.minimum(starts + 1 + (jnp.arange(M) % 4), N - 1)
    anchors = jnp.stack([jnp.arange(M), starts, ends], axis=1).astype(jnp.int32)

    # conv1d(in=D, out=1, k=1) parameters: weight (1, D, 1), bias (1,).
    conv_w = jax.random.normal(k_w, (1, D, 1), dtype=jnp.float32) / jnp.sqrt(D)
    conv_b = jax.random.normal(k_b, (1,), dtype=jnp.float32) * 0.01

    out = self_attention_pooling(x, conv_w, conv_b, anchors)
    out = jax.block_until_ready(out)

    mask = build_mask(M, np.array(anchors), N)
    ref = reference(x, conv_w, conv_b, mask)
    assert out.shape == (B, M, D), out.shape
    np.testing.assert_allclose(np.asarray(out), np.asarray(ref), rtol=2e-3, atol=1e-3)

    print("KERNEL_OK")
</pallas_src>

<mosaic_0001>
module attributes {stable_mosaic.version = 11 : i64} {
  func.func @_attn_pool_kernel(%arg0: i32, %arg1: i32, %arg2: memref<1x128x128xf32, #tpu.memory_space<vmem>>, %arg3: memref<1x128xf32, #tpu.memory_space<vmem>>, %arg4: memref<1xf32, #tpu.memory_space<smem>>, %arg5: memref<8x1xi32, #tpu.memory_space<vmem>>, %arg6: memref<8x1xi32, #tpu.memory_space<vmem>>, %arg7: memref<1x8x128xf32, #tpu.memory_space<vmem>>, %arg8: memref<1x1x128xf32, #tpu.memory_space<vmem>>, %arg9: memref<1x128x128xf32, #tpu.memory_space<vmem>>) attributes {dimension_semantics = [#tpu.dimension_semantics<parallel>, #tpu.dimension_semantics<arbitrary>], iteration_bounds = array<i64: 2, 1>, scalar_prefetch = 0 : i64, scratch_operands = 2 : i64, tpu.core_type = #tpu.core_type<tc>, window_params = [{transform_indices = @transform_0, window_bounds = array<i64: 1, 128, 128>}, {pipeline_mode = #tpu.pipeline_mode<synchronous>, transform_indices = @transform_1, window_bounds = array<i64: 1, 128>}, {transform_indices = @transform_2, window_bounds = array<i64: 1>}, {transform_indices = @transform_3, window_bounds = array<i64: 8, 1>}, {transform_indices = @transform_4, window_bounds = array<i64: 8, 1>}, {transform_indices = @transform_5, window_bounds = array<i64: 1, 8, 128>}]} {
    %c0_i32 = arith.constant 0 : i32
    %0 = arith.cmpi eq, %arg1, %c0_i32 : i32
    %1 = arith.extui %0 : i1 to i32
    %c0_i32_0 = arith.constant 0 : i32
    %2 = arith.cmpi ne, %1, %c0_i32_0 : i32
    scf.if %2 {
      %c0_17 = arith.constant 0 : index
      %c0_18 = arith.constant 0 : index
      %37 = vector.load %arg3[%c0_17, %c0_18] : memref<1x128xf32, #tpu.memory_space<vmem>>, vector<1x128xf32>
      %c0_19 = arith.constant 0 : index
      %c0_20 = arith.constant 0 : index
      %c0_21 = arith.constant 0 : index
      %38 = vector.load %arg2[%c0_19, %c0_20, %c0_21] : memref<1x128x128xf32, #tpu.memory_space<vmem>>, vector<1x128x128xf32>
      %39 = vector.shape_cast %38 : vector<1x128x128xf32> to vector<128x128xf32>
      %cst_22 = arith.constant dense<0.000000e+00> : vector<1x128xf32>
      %40 = tpu.matmul %37, %39, %cst_22 {dimension_numbers = #tpu.dot_dimension_numbers<[1], [0], [0], [1], [0, 0, 1, 1], [], []>} : vector<1x128xf32>, vector<128x128xf32>, vector<1x128xf32> -> vector<1x128xf32>
      %c0_23 = arith.constant 0 : index
      %41 = memref.load %arg4[%c0_23] : memref<1xf32, #tpu.memory_space<smem>>
      %42 = vector.broadcast %41 : f32 to vector<1x128xf32>
      %43 = arith.addf %40, %42 : vector<1x128xf32>
      %c0_24 = arith.constant 0 : index
      %c0_25 = arith.constant 0 : index
      %c0_26 = arith.constant 0 : index
      %44 = vector.load %arg8[%c0_24, %c0_25, %c0_26] : memref<1x1x128xf32, #tpu.memory_space<vmem>>, vector<1x1x128xf32>
      %45 = vector.shape_cast %44 : vector<1x1x128xf32> to vector<1x128xf32>
      %46 = vector.shape_cast %43 : vector<1x128xf32> to vector<1x1x128xf32>
      tpu.vector_store %arg8[%c0_24, %c0_25, %c0_26], %46 {strides = array<i32>} : memref<1x1x128xf32, #tpu.memory_space<vmem>>, vector<1x1x128xf32>,
      %47 = tpu.transpose %39, [1, 0] : vector<128x128xf32> -> vector<128x128xf32>
      %c0_27 = arith.constant 0 : index
      %c0_28 = arith.constant 0 : index
      %c0_29 = arith.constant 0 : index
      %48 = vector.load %arg9[%c0_27, %c0_28, %c0_29] : memref<1x128x128xf32, #tpu.memory_space<vmem>>, vector<1x128x128xf32>
      %49 = vector.shape_cast %48 : vector<1x128x128xf32> to vector<128x128xf32>
      %50 = vector.shape_cast %47 : vector<128x128xf32> to vector<1x128x128xf32>
      tpu.vector_store %arg9[%c0_27, %c0_28, %c0_29], %50 {strides = array<i32>} : memref<1x128x128xf32, #tpu.memory_space<vmem>>, vector<1x128x128xf32>,
    } else {
    }
    %3 = tpu.iota {dimensions = array<i32: 1>} : vector<8x128xi32>
    %c0 = arith.constant 0 : index
    %c0_1 = arith.constant 0 : index
    %4 = vector.load %arg5[%c0, %c0_1] : memref<8x1xi32, #tpu.memory_space<vmem>>, vector<8x1xi32>
    %5 = vector.broadcast %4 : vector<8x1xi32> to vector<8x128xi32>
    %6 = arith.cmpi sge, %3, %5 : vector<8x128xi32>
    %c0_2 = arith.constant 0 : index
    %c0_3 = arith.constant 0 : index
    %7 = vector.load %arg6[%c0_2, %c0_3] : memref<8x1xi32, #tpu.memory_space<vmem>>, vector<8x1xi32>
    %8 = vector.broadcast %7 : vector<8x1xi32> to vector<8x128xi32>
    %9 = arith.cmpi sle, %3, %8 : vector<8x128xi32>
    %10 = arith.andi %6, %9 : vector<8x128xi1>
    %c0_4 = arith.constant 0 : index
    %c0_5 = arith.constant 0 : index
    %c0_6 = arith.constant 0 : index
    %11 = vector.load %arg8[%c0_4, %c0_5, %c0_6] : memref<1x1x128xf32, #tpu.memory_space<vmem>>, vector<1x1x128xf32>
    %12 = vector.shape_cast %11 : vector<1x1x128xf32> to vector<1x128xf32>
    %cst = arith.constant 1.000000e+10 : f32
    %13 = vector.broadcast %cst : f32 to vector<1x128xf32>
    %14 = arith.subf %12, %13 : vector<1x128xf32>
    %15 = vector.shape_cast %12 : vector<1x128xf32> to vector<1x128xf32>
    %16 = vector.broadcast %15 : vector<1x128xf32> to vector<8x128xf32>
    %17 = vector.shape_cast %14 : vector<1x128xf32> to vector<1x128xf32>
    %18 = vector.broadcast %17 : vector<1x128xf32> to vector<8x128xf32>
    %19 = arith.select %10, %16, %18 : vector<8x128xi1>, vector<8x128xf32>
    %cst_7 = arith.constant dense<0xFF800000> : vector<8xf32>
    %20 = vector.multi_reduction <maximumf>, %19, %cst_7 [1] : vector<8x128xf32> to vector<8xf32>
    %21 = vector.shape_cast %20 : vector<8xf32> to vector<8x1xf32>
    %22 = vector.broadcast %21 : vector<8x1xf32> to vector<8x128xf32>
    %23 = arith.subf %19, %22 : vector<8x128xf32>
    %24 = math.exp %23 : vector<8x128xf32>
    %cst_8 = arith.constant dense<0.000000e+00> : vector<8xf32>
    %25 = vector.multi_reduction <add>, %24, %cst_8 [1] : vector<8x128xf32> to vector<8xf32>
    %26 = vector.shape_cast %25 : vector<8xf32> to vector<8x1xf32>
    %cst_9 = arith.constant 1.000000e+00 : f32
    %27 = vector.broadcast %cst_9 : f32 to vector<8x1xf32>
    %28 = arith.divf %27, %26 : vector<8x1xf32>
    %29 = vector.broadcast %28 : vector<8x1xf32> to vector<8x128xf32>
    %30 = arith.mulf %24, %29 : vector<8x128xf32>
    %c0_10 = arith.constant 0 : index
    %c0_11 = arith.constant 0 : index
    %c0_12 = arith.constant 0 : index
    %31 = vector.load %arg9[%c0_10, %c0_11, %c0_12] : memref<1x128x128xf32, #tpu.memory_space<vmem>>, vector<1x128x128xf32>
    %32 = vector.shape_cast %31 : vector<1x128x128xf32> to vector<128x128xf32>
    %cst_13 = arith.constant dense<0.000000e+00> : vector<8x128xf32>
    %33 = tpu.matmul %30, %32, %cst_13 {dimension_numbers = #tpu.dot_dimension_numbers<[1], [0], [0], [1], [0, 0, 1, 1], [], []>} : vector<8x128xf32>, vector<128x128xf32>, vector<8x128xf32> -> vector<8x128xf32>
    %c0_14 = arith.constant 0 : index
    %c0_15 = arith.constant 0 : index
    %c0_16 = arith.constant 0 : index
    %34 = vector.load %arg7[%c0_14, %c0_15, %c0_16] : memref<1x8x128xf32, #tpu.memory_space<vmem>>, vector<1x8x128xf32>
    %35 = vector.shape_cast %34 : vector<1x8x128xf32> to vector<8x128xf32>
    %36 = vector.shape_cast %33 : vector<8x128xf32> to vector<1x8x128xf32>
    tpu.vector_store %arg7[%c0_14, %c0_15, %c0_16], %36 {strides = array<i32>} : memref<1x8x128xf32, #tpu.memory_space<vmem>>, vector<1x8x128xf32>,
    return
  }
  func.func @transform_0(%arg0: i32, %arg1: i32) -> (i32, i32, i32) {
    %c0_i32 = arith.constant 0 : i32
    %c0_i32_0 = arith.constant 0 : i32
    %c0_i32_1 = arith.constant 0 : i32
    return %arg0, %c0_i32, %c0_i32_0 : i32, i32, i32
  }
  func.func @transform_1(%arg0: i32, %arg1: i32) -> (i32, i32) {
    %c0_i32 = arith.constant 0 : i32
    %c0_i32_0 = arith.constant 0 : i32
    %c0_i32_1 = arith.constant 0 : i32
    return %c0_i32, %c0_i32_0 : i32, i32
  }
  func.func @transform_2(%arg0: i32, %arg1: i32) -> i32 {
    %c0_i32 = arith.constant 0 : i32
    %c0_i32_0 = arith.constant 0 : i32
    return %c0_i32 : i32
  }
  func.func @transform_3(%arg0: i32, %arg1: i32) -> (i32, i32) {
    %c0_i32 = arith.constant 0 : i32
    %c0_i32_0 = arith.constant 0 : i32
    return %arg1, %c0_i32 : i32, i32
  }
  func.func @transform_4(%arg0: i32, %arg1: i32) -> (i32, i32) {
    %c0_i32 = arith.constant 0 : i32
    %c0_i32_0 = arith.constant 0 : i32
    return %arg1, %c0_i32 : i32, i32
  }
  func.func @transform_5(%arg0: i32, %arg1: i32) -> (i32, i32, i32) {
    %c0_i32 = arith.constant 0 : i32
    %c0_i32_0 = arith.constant 0 : i32
    return %arg0, %arg1, %c0_i32 : i32, i32, i32
  }
}

</mosaic_0001>

<llo_original>
// kernel: self_attention_pooling.1
$region0: #{self_attention_pooling.1}
  #allocation0 [shape = 'u32[]', space=smem, size = 0x4, offset = 0x4, fixed_abs, tag = 'smem constant byte address 0x4 - core index']
  #allocation1 [shape = 'u32[144,128]{1,0:T(1,128)}', space=vmem, size = 0x12000, scoped, tag = 'internal scratch']
  #allocation2 [shape = 'f32[1,1,128]{2,1,0:T(1,128)}', space=vmem, size = 0x200, scoped, tag = 'scratch operand']
  #allocation3 [shape = 'f32[1,128,128]{2,1,0:T(8,128)}', space=vmem, size = 0x10000, scoped, tag = 'scratch operand']
  #allocation4 [shape = 'f32[1]{0:T(128)S(6)}', space=smem, size = 0x200, scoped, tag = 'scoped memory for self_attention_pooling.1']
  %s0 = inlined_call_operand.hbm [shape: f32[2,128,128], index: 0, kind: input, shape index: {}]
  %s1 = inlined_call_operand.vmem [shape: f32[1,128], index: 1, kind: input, shape index: {}]
  %s2 = inlined_call_operand.<no memory space> [shape: f32[1], index: 2, kind: input, shape index: {}]
  %s3 = inlined_call_operand.vmem [shape: s32[8,1], index: 3, kind: input, shape index: {}]
  %s4 = inlined_call_operand.vmem [shape: s32[8,1], index: 4, kind: input, shape index: {}]
  %s5 = inlined_call_operand.hbm [shape: f32[2,8,128], index: 5, kind: output, shape index: {}]
  %s6 = sld [smem:[#allocation0]]
  $region61: #{self_attention_pooling.1} parent=0
    _
  %s8 = ssub.s32 1, %s6
  %s9 = scalar_select 0, %s8, %s6
  %10 = sst [smem:[#allocation4]] %s2
  $region1: #{self_attention_pooling.1} parent=0
    #allocation5 [shape = 'u8[131072]{0}', space=vmem, size = 0x20000, scoped, tag = 'input window, operand 0']
    #allocation6 [shape = 's32[2]{0}', space=sflag, size = 0x8, scoped, tag = 'scoped memory for self_attention_pooling.1']
    #allocation7 [shape = 's32[2]{0}', space=sflag, size = 0x8, scoped, tag = 'scoped memory for self_attention_pooling.1']
    #allocation8 [shape = 'u8[8192]{0}', space=vmem, size = 0x2000, scoped, tag = 'output window, operand 0']
    %11 = vsyncpa [#allocation6], 0
    %s12 = scalar_lea.sflag [#allocation6], 1
    %13 = vsyncpa %s12, 0
    %14 = vsyncpa [#allocation7], 0
    %s15 = scalar_lea.sflag [#allocation7], 1
    %16 = vsyncpa %s15, 0
    loop: start=0, step=1, limit=4
    $region2: #{self_attention_pooling.1} parent=1 // loop_pre_header
      _
    $region3: #{self_attention_pooling.1} parent=1 // loop_header
      %s18 = sphi 0, %s22
      %p19 = scmp.ge.s32.totalorder %s18, 4
      %s25 = sphi 0, %s37
      %s26 = sphi 0, %s33
      %s27 = sphi 0, %s25
      %s28 = sphi 0, %s26
      %s29 = sphi 0, %s27
      %s30 = sphi 0, %s28
      %s40 = sphi 0, %s42
      %s43 = sphi 0, %s40
      %s44 = sphi 0, %s43
      %s60 = sphi 0, %s44
      %s64 = sphi 0, %s64
      %s66 = sphi 0, %s64
      %s67 = sphi 0, %s66
      %s81 = sphi 0, %s67
      %s85 = sphi 0, %s85
      %s87 = sphi 0, %s85
      %s88 = sphi 0, %s87
      %s102 = sphi 0, %s88
      %s108 = sphi 0, %s110
      %s111 = sphi 0, %s108
      %s112 = sphi 0, %s111
      %s128 = sphi 0, %s112
      %s134 = sphi 0, %s136
      %s137 = sphi 0, %s134
      %s138 = sphi 0, %s137
      %s154 = sphi 0, %s138
      %s162 = sphi 0, %s164
      %s165 = sphi 0, %s162
      %s166 = sphi 0, %s165
      %s182 = sphi 0, %s166
    $region4: #{self_attention_pooling.1} parent=1 // loop_header_branch
      %21 = sbr.rel (%p19) target = $region8
    $region5: #{self_attention_pooling.1} parent=1 // loop_body
      %s23 = ssub.s32 %s18, 1
      %s24 = ssub.s32 %s18, 2
      %s31 = sadd.s32 1, %s26
      %p32 = scmp.ge.s32.totalorder %s31, 1
      %s33 = scalar_select %p32, 0, %s31
      %s34 = sadd.s32 1, %s25
      %s35 = scalar_select %p32, %s34, %s25
      %p36 = scmp.ge.s32.totalorder %s35, 2
      %s37 = scalar_select %p36, 0, %s35
      %s38 = ssub.s32 %s25, %s37
      %p39 = scmp.eq.s32.totalorder %s38, 0
      %s41 = sadd.s32 %s40, 1
      %s42 = scalar_select %p39, %s40, %s41
      %p45 = pneg %p39
      %p46 = scmp.eq.s32.totalorder %s18, 1
      %p47 = por %p45, %p46
      %p48 = scmp.ne.s32.totalorder %s40, %s43
      %p49 = scmp.eq.s32.totalorder %s18, 0
      %p50 = por %p48, %p49
      %p51 = scmp.ne.s32.totalorder %s40, %s43
      %p52 = scmp.eq.s32.totalorder %s23, 1
      %p53 = por %p51, %p52
      %p54 = scmp.ne.s32.totalorder %s43, %s44
      %p55 = scmp.eq.s32.totalorder %s23, 0
      %p56 = por %p54, %p55
      %p57 = scmp.ne.s32.totalorder %s43, %s44
      %p58 = scmp.eq.s32.totalorder %s24, 1
      %p59 = por %p57, %p58
      %p61 = scmp.ne.s32.totalorder %s44, %s60
      %p62 = scmp.eq.s32.totalorder %s24, 0
      %p63 = por %p61, %p62
      %s65 = sadd.s32 %s64, 1
      %p68 = scmp.eq.s32.totalorder %s18, 1
      %p69 = scmp.ne.s32.totalorder %s64, %s66
      %p70 = scmp.eq.s32.totalorder %s18, 0
      %p71 = por %p69, %p70
      %p72 = scmp.ne.s32.totalorder %s64, %s66
      %p73 = scmp.eq.s32.totalorder %s23, 1
      %p74 = por %p72, %p73
      %p75 = scmp.ne.s32.totalorder %s66, %s67
      %p76 = scmp.eq.s32.totalorder %s23, 0
      %p77 = por %p75, %p76
      %p78 = scmp.ne.s32.totalorder %s66, %s67
      %p79 = scmp.eq.s32.totalorder %s24, 1
      %p80 = por %p78, %p79
      %p82 = scmp.ne.s32.totalorder %s67, %s81
      %p83 = scmp.eq.s32.totalorder %s24, 0
      %p84 = por %p82, %p83
      %s86 = sadd.s32 %s85, 1
      %p89 = scmp.eq.s32.totalorder %s18, 1
      %p90 = scmp.ne.s32.totalorder %s85, %s87
      %p91 = scmp.eq.s32.totalorder %s18, 0
      %p92 = por %p90, %p91
      %p93 = scmp.ne.s32.totalorder %s85, %s87
      %p94 = scmp.eq.s32.totalorder %s23, 1
      %p95 = por %p93, %p94
      %p96 = scmp.ne.s32.totalorder %s87, %s88
      %p97 = scmp.eq.s32.totalorder %s23, 0
      %p98 = por %p96, %p97
      %p99 = scmp.ne.s32.totalorder %s87, %s88
      %p100 = scmp.eq.s32.totalorder %s24, 1
      %p101 = por %p99, %p100
      %p103 = scmp.ne.s32.totalorder %s88, %s102
      %p104 = scmp.eq.s32.totalorder %s24, 0
      %p105 = por %p103, %p104
      %s106 = ssub.s32 %s26, %s33
      %p107 = scmp.eq.s32.totalorder %s106, 0
      %s109 = sadd.s32 %s108, 1
      %s110 = scalar_select %p107, %s108, %s109
      %p113 = pneg %p107
      %p114 = scmp.eq.s32.totalorder %s18, 1
      %p115 = por %p113, %p114
      %p116 = scmp.ne.s32.totalorder %s108, %s111
      %p117 = scmp.eq.s32.totalorder %s18, 0
      %p118 = por %p116, %p117
      %p119 = scmp.ne.s32.totalorder %s108, %s111
      %p120 = scmp.eq.s32.totalorder %s23, 1
      %p121 = por %p119, %p120
      %p122 = scmp.ne.s32.totalorder %s111, %s112
      %p123 = scmp.eq.s32.totalorder %s23, 0
      %p124 = por %p122, %p123
      %p125 = scmp.ne.s32.totalorder %s111, %s112
      %p126 = scmp.eq.s32.totalorder %s24, 1
      %p127 = por %p125, %p126
      %p129 = scmp.ne.s32.totalorder %s112, %s128
      %p130 = scmp.eq.s32.totalorder %s24, 0
      %p131 = por %p129, %p130
      %s132 = ssub.s32 %s26, %s33
      %p133 = scmp.eq.s32.totalorder %s132, 0
      %s135 = sadd.s32 %s134, 1
      %s136 = scalar_select %p133, %s134, %s135
      %p139 = pneg %p133
      %p140 = scmp.eq.s32.totalorder %s18, 1
      %p141 = por %p139, %p140
      %p142 = scmp.ne.s32.totalorder %s134, %s137
      %p143 = scmp.eq.s32.totalorder %s18, 0
      %p144 = por %p142, %p143
      %p145 = scmp.ne.s32.totalorder %s134, %s137
      %p146 = scmp.eq.s32.totalorder %s23, 1
      %p147 = por %p145, %p146
      %p148 = scmp.ne.s32.totalorder %s137, %s138
      %p149 = scmp.eq.s32.totalorder %s23, 0
      %p150 = por %p148, %p149
      %p151 = scmp.ne.s32.totalorder %s137, %s138
      %p152 = scmp.eq.s32.totalorder %s24, 1
      %p153 = por %p151, %p152
      %p155 = scmp.ne.s32.totalorder %s138, %s154
      %p156 = scmp.eq.s32.totalorder %s24, 0
      %p157 = por %p155, %p156
      %s158 = ssub.s32 %s25, %s37
      %s159 = ssub.s32 %s26, %s33
      %s160 = sor.u32 %s158, %s159
      %p161 = scmp.eq.s32.totalorder %s160, 0
      %s163 = sadd.s32 %s162, 1
      %s164 = scalar_select %p161, %s162, %s163
      %p167 = pneg %p161
      %p168 = scmp.eq.s32.totalorder %s18, 1
      %p169 = por %p167, %p168
      %p170 = scmp.ne.s32.totalorder %s162, %s165
      %p171 = scmp.eq.s32.totalorder %s18, 0
      %p172 = por %p170, %p171
      %p173 = scmp.ne.s32.totalorder %s162, %s165
      %p174 = scmp.eq.s32.totalorder %s23, 1
      %p175 = por %p173, %p174
      %p176 = scmp.ne.s32.totalorder %s165, %s166
      %p177 = scmp.eq.s32.totalorder %s23, 0
      %p178 = por %p176, %p177
      %p179 = scmp.ne.s32.totalorder %s165, %s166
      %p180 = scmp.eq.s32.totalorder %s24, 1
      %p181 = por %p179, %p180
      %p183 = scmp.ne.s32.totalorder %s166, %s182
      %p184 = scmp.eq.s32.totalorder %s24, 0
      %p185 = por %p183, %p184
      %p186 = scmp.le.s32.totalorder 1, %s18
      %p187 = scmp.lt.s32.totalorder %s18, 3
      %p188 = pnand %p186, %p187
      %p189 = pneg %p188
      // Predicated region
      $region9: #{self_attention_pooling.1} parent=5 // pred_check
        _
      $region10: #{self_attention_pooling.1} parent=5 // pred_check_branch
        %191 = sbr.rel (%p188) target = $region12
      $region11: #{self_attention_pooling.1} parent=5 // pred_region
        %s192 = ssub.s32 %s18, 1
        // Predicated region
        $region13: #{self_attention_pooling.1} parent=11 // pred_check
          %p193 = pneg %p77
        $region14: #{self_attention_pooling.1} parent=11 // pred_check_branch
          %195 = sbr.rel (%p193) target = $region16
        $region15: #{self_attention_pooling.1} parent=11 // pred_region
          _
        $region16: #{self_attention_pooling.1} parent=11 // pred_fallthru
          _
        // Predicated region
        $region17: #{self_attention_pooling.1} parent=11 // pred_check
          %p196 = pneg %p98
        $region18: #{self_attention_pooling.1} parent=11 // pred_check_branch
          %198 = sbr.rel (%p196) target = $region20
        $region19: #{self_attention_pooling.1} parent=11 // pred_region
          _
        $region20: #{self_attention_pooling.1} parent=11 // pred_fallthru
          _
        // Predicated region
        $region21: #{self_attention_pooling.1} parent=11 // pred_check
          %p199 = pneg %p124
        $region22: #{self_attention_pooling.1} parent=11 // pred_check_branch
          %201 = sbr.rel (%p199) target = $region24
        $region23: #{self_attention_pooling.1} parent=11 // pred_region
          %p202 = scmp.lt.s32.totalorder %s28, 0
          %s203 = scalar_select %p202, %s28, 0
          %s204 = smul.addr %s203, 8
          %s205 = scalar_lea.vmem %s3, %s204
        $region24: #{self_attention_pooling.1} parent=11 // pred_fallthru
          _
        // Predicated region
        $region25: #{self_attention_pooling.1} parent=11 // pred_check
          %p206 = pneg %p150
        $region26: #{self_attention_pooling.1} parent=11 // pred_check_branch
          %208 = sbr.rel (%p206) target = $region28
        $region27: #{self_attention_pooling.1} parent=11 // pred_region
          %p209 = scmp.lt.s32.totalorder %s28, 0
          %s210 = scalar_select %p209, %s28, 0
          %s211 = smul.addr %s210, 8
          %s212 = scalar_lea.vmem %s4, %s211
        $region28: #{self_attention_pooling.1} parent=11 // pred_fallthru
          _
      $region12: #{self_attention_pooling.1} parent=5 // pred_fallthru
        _
      %p213 = scmp.lt.s32.totalorder %s18, 2
      // Predicated region
      $region29: #{self_attention_pooling.1} parent=5 // pred_check
        %p214 = pneg %p213
      $region30: #{self_attention_pooling.1} parent=5 // pred_check_branch
        %216 = sbr.rel (%p214) target = $region32
      $region31: #{self_attention_pooling.1} parent=5 // pred_region
        // Predicated region
        $region33: #{self_attention_pooling.1} parent=31 // pred_check
          %p217 = pneg %p50
        $region34: #{self_attention_pooling.1} parent=31 // pred_check_branch
          %219 = sbr.rel (%p217) target = $region36
        $region35: #{self_attention_pooling.1} parent=31 // pred_region
          %s220 = sand.u32 %s40, 1
          %s221 = scalar_lea.sflag [#allocation6], %s220
          %s222 = sand.u32 %s40, 1
          %s223 = smul.addr %s222, 128
          %s224 = scalar_lea.vmem [#allocation5], %s223
          %s226 = ssub.s32 2048, 2048
          %227 = vsyncadd %s221, %s226
          %s228 = smul.addr %s25, 16
          %s229 = smul.addr %s228, 128
          %s230 = scalar_lea.hbm %s0, %s229
          %s231 = sshll.u32 %s224, 4
          %s232 = int_to_ptr.vmem [resolvable:$true] %s231
          %237 = dma.hbm_to_vmem [thread:$0]  %s230, 2048, %s232, %s221, 128, 128, 8
        $region36: #{self_attention_pooling.1} parent=31 // pred_fallthru
          _
      $region32: #{self_attention_pooling.1} parent=5 // pred_fallthru
        _
      %p238 = scmp.le.s32.totalorder 1, %s18
      %p239 = scmp.lt.s32.totalorder %s18, 3
      %p240 = pnand %p238, %p239
      %p241 = pneg %p240
      // Predicated region
      $region37: #{self_attention_pooling.1} parent=5 // pred_check
        _
      $region38: #{self_attention_pooling.1} parent=5 // pred_check_branch
        %243 = sbr.rel (%p240) target = $region40
      $region39: #{self_attention_pooling.1} parent=5 // pred_region
        %s244 = ssub.s32 %s18, 1
        %s245 = sand.u32 %s43, 1
        %s246 = scalar_lea.sflag [#allocation6], %s245
        %s247 = sand.u32 %s43, 1
        %s248 = smul.addr %s247, 128
        %s249 = scalar_lea.vmem [#allocation5], %s248
        // Predicated region
        $region41: #{self_attention_pooling.1} parent=39 // pred_check
          %p250 = pneg %p56
        $region42: #{self_attention_pooling.1} parent=39 // pred_check_branch
          %252 = sbr.rel (%p250) target = $region44
        $region43: #{self_attention_pooling.1} parent=39 // pred_region
          %253 = dma.done %s246, 2048
        $region44: #{self_attention_pooling.1} parent=39 // pred_fallthru
          _
        %s254 = sand.u32 %s43, 1
        %s255 = scalar_lea.sflag [#allocation6], %s254
        %s256 = sand.u32 %s43, 1
        %s257 = smul.addr %s256, 128
        %s258 = scalar_lea.vmem [#allocation5], %s257
        %p259 = pneg %p56
        %p260 = pneg %p53
        %p261 = pneg %p77
        %p262 = pneg %p74
        %p263 = pneg %p98
        %p264 = pneg %p95
        %p265 = scmp.lt.s32.totalorder %s28, 0
        %s266 = scalar_select %p265, %s28, 0
        %s267 = smul.addr %s266, 8
        %s268 = scalar_lea.vmem %s3, %s267
        %p269 = pneg %p124
        %p270 = pneg %p121
        %p271 = scmp.lt.s32.totalorder %s28, 0
        %s272 = scalar_select %p271, %s28, 0
        %s273 = smul.addr %s272, 8
        %s274 = scalar_lea.vmem %s4, %s273
        %p275 = pneg %p150
        %p276 = pneg %p147
        %p277 = pneg %p178
        %p278 = pneg %p175
        %s279 = sand.u32 %s165, 1
        %s280 = scalar_lea.sflag [#allocation7], %s279
        %s281 = sand.u32 %s165, 1
        %s282 = smul.addr %s281, 8
        %s283 = scalar_lea.vmem [#allocation8], %s282
        %p284 = scmp.lt.s32.totalorder %s28, 0
        %s285 = scalar_select %p284, %s28, 0
        %s286 = smul.addr %s285, 8
        %s287 = scalar_lea.vmem %s3, %s286
        %p288 = scmp.lt.s32.totalorder %s28, 0
        %s289 = scalar_select %p288, %s28, 0
        %s290 = smul.addr %s289, 8
        %s291 = scalar_lea.vmem %s4, %s290
        %p292 = scmp.eq.s32.totalorder %s28, 0
        // Predicated region
        $region45: #{self_attention_pooling.1} parent=39 // pred_check
          %p293 = pneg %p292
        $region46: #{self_attention_pooling.1} parent=39 // pred_check_branch
          %295 = sbr.rel (%p293) target = $region48
        $region47: #{self_attention_pooling.1} parent=39 // pred_region
          %v296 = vld [vmem:[%s1] sm:$0x1]
          %v297 = vld [vmem:[%s249] sm:$0xff]
          %v298 = vld [vmem:[%s249 + $0x8] sm:$0xff]
          %v299 = vld [vmem:[%s249 + $0x10] sm:$0xff]
          %v300 = vld [vmem:[%s249 + $0x18] sm:$0xff]
          %v301 = vld [vmem:[%s249 + $0x20] sm:$0xff]
          %v302 = vld [vmem:[%s249 + $0x28] sm:$0xff]
          %v303 = vld [vmem:[%s249 + $0x30] sm:$0xff]
          %v304 = vld [vmem:[%s249 + $0x38] sm:$0xff]
          %v305 = vld [vmem:[%s249 + $0x40] sm:$0xff]
          %v306 = vld [vmem:[%s249 + $0x48] sm:$0xff]
          %v307 = vld [vmem:[%s249 + $0x50] sm:$0xff]
          %v308 = vld [vmem:[%s249 + $0x58] sm:$0xff]
          %v309 = vld [vmem:[%s249 + $0x60] sm:$0xff]
          %v310 = vld [vmem:[%s249 + $0x68] sm:$0xff]
          %v311 = vld [vmem:[%s249 + $0x70] sm:$0xff]
          %v312 = vld [vmem:[%s249 + $0x78] sm:$0xff]
          %s313 = sld [smem:[#allocation4]]
          %v314 = vstv %s313
          %315 = vmatprep.subr.mxu0 0.0
          %316 = vmatpush1.msra.mxu0 %v312
          %317 = vmatprep.subr.mxu0 0.0
          %318 = vmatpush1.msra.mxu0 %v311
          %319 = vmatprep.subr.mxu0 0.0
          %320 = vmatpush1.msra.mxu0 %v310
          %321 = vmatprep.subr.mxu0 0.0
          %322 = vmatpush1.msra.mxu0 %v309
          %323 = vmatprep.subr.mxu0 0.0
          %324 = vmatpush1.msra.mxu0 %v308
          %325 = vmatprep.subr.mxu0 0.0
          %326 = vmatpush1.msra.mxu0 %v307
          %327 = vmatprep.subr.mxu0 0.0
          %328 = vmatpush1.msra.mxu0 %v306
          %329 = vmatprep.subr.mxu0 0.0
          %330 = vmatpush1.msra.mxu0 %v305
          %331 = vmatprep.subr.mxu0 0.0
          %332 = vmatpush1.msra.mxu0 %v304
          %333 = vmatprep.subr.mxu0 0.0
          %334 = vmatpush1.msra.mxu0 %v303
          %335 = vmatprep.subr.mxu0 0.0
          %336 = vmatpush1.msra.mxu0 %v302
          %337 = vmatprep.subr.mxu0 0.0
          %338 = vmatpush1.msra.mxu0 %v301
          %339 = vmatprep.subr.mxu0 0.0
          %340 = vmatpush1.msra.mxu0 %v300
          %341 = vmatprep.subr.mxu0 0.0
          %342 = vmatpush1.msra.mxu0 %v299
          %343 = vmatprep.subr.mxu0 0.0
          %344 = vmatpush1.msra.mxu0 %v298
          %345 = vmatprep.subr.mxu0 0.0
          %346 = vmatpush1.msra.mxu0 %v297
          %347 = vmatprep.subr.mxu0 0.0
          %348 = vmatpush2.msra.mxu0 0.0
          %349 = vmatprep.subr.mxu0 0.0
          %350 = vmatpush2.msra.mxu0 0.0
          %351 = vmatprep.subr.mxu0 0.0
          %352 = vmatpush2.msra.mxu0 0.0
          %353 = vmatprep.subr.mxu0 0.0
          %354 = vmatpush2.msra.mxu0 0.0
          %355 = vmatprep.subr.mxu0 0.0
          %356 = vmatpush2.msra.mxu0 0.0
          %357 = vmatprep.subr.mxu0 0.0
          %358 = vmatpush2.msra.mxu0 0.0
          %359 = vmatprep.subr.mxu0 0.0
          %360 = vmatpush2.msra.mxu0 0.0
          %361 = vmatprep.subr.mxu0 0.0
          %362 = vmatpush2.msra.mxu0 0.0
          %363 = vmatprep.subr.mxu0 0.0
          %364 = vmatpush2.msra.mxu0 0.0
          %365 = vmatprep.subr.mxu0 0.0
          %366 = vmatpush2.msra.mxu0 0.0
          %367 = vmatprep.subr.mxu0 0.0
          %368 = vmatpush2.msra.mxu0 0.0
          %369 = vmatprep.subr.mxu0 0.0
          %370 = vmatpush2.msra.mxu0 0.0
          %371 = vmatprep.subr.mxu0 0.0
          %372 = vmatpush2.msra.mxu0 0.0
          %373 = vmatprep.subr.mxu0 0.0
          %374 = vmatpush2.msra.mxu0 0.0
          %375 = vmatprep.subr.mxu0 0.0
          %376 = vmatpush2.msra.mxu0 0.0
          %377 = vmatprep.subr.mxu0 0.0
          %378 = vmatpush2.msra.mxu0 0.0
          %379 = vmatprep.mubr.f32.mxu0 0.0
          %380 = vmatmul.mubr.f32.gmra.mxu0 %v296
          %v381 = vpop.f32.mrf.mxu0
          %v382 = vadd.f32 %v314, %v381
          %v383 = vpop.f32.mrf.mxu0
          %384 = vdwg.mxu0
          %385 = vst [vmem:[#allocation2] sm:$0x1] %v382
          %386 = vxpose.xlu0.b32.start [1/16] %v297, 128
          %387 = vxpose.xlu0.b32.cont [2/16] %v298, 128
          %388 = vxpose.xlu0.b32.cont [3/16] %v299, 128
          %389 = vxpose.xlu0.b32.cont [4/16] %v300, 128
          %390 = vxpose.xlu0.b32.cont [5/16] %v301, 128
          %391 = vxpose.xlu0.b32.cont [6/16] %v302, 128
          %392 = vxpose.xlu0.b32.cont [7/16] %v303, 128
          %393 = vxpose.xlu0.b32.cont [8/16] %v304, 128
          %394 = vxpose.xlu0.b32.cont [9/16] %v305, 128
          %395 = vxpose.xlu0.b32.cont [10/16] %v306, 128
          %396 = vxpose.xlu0.b32.cont [11/16] %v307, 128
          %397 = vxpose.xlu0.b32.cont [12/16] %v308, 128
          %398 = vxpose.xlu0.b32.cont [13/16] %v309, 128
          %399 = vxpose.xlu0.b32.cont [14/16] %v310, 128
          %400 = vxpose.xlu0.b32.cont [15/16] %v311, 128
          %401 = vxpose.xlu0.b32.end [16/16] %v312, 128
          %v402 = vpop.trf.xlu0
          %v403 = vpop.trf.xlu0
          %v404 = vpop.trf.xlu0
          %v405 = vpop.trf.xlu0
          %v406 = vpop.trf.xlu0
          %v407 = vpop.trf.xlu0
          %v408 = vpop.trf.xlu0
          %v409 = vpop.trf.xlu0
          %v410 = vpop.trf.xlu0
          %v411 = vpop.trf.xlu0
          %v412 = vpop.trf.xlu0
          %v413 = vpop.trf.xlu0
          %v414 = vpop.trf.xlu0
          %v415 = vpop.trf.xlu0
          %v416 = vpop.trf.xlu0
          %v417 = vpop.trf.xlu0
          %418 = vst [vmem:[#allocation3] sm:$0xff] %v402
          %419 = vst [vmem:[#allocation3 + $0x8] sm:$0xff] %v403
          %420 = vst [vmem:[#allocation3 + $0x10] sm:$0xff] %v404
          %421 = vst [vmem:[#allocation3 + $0x18] sm:$0xff] %v405
          %422 = vst [vmem:[#allocation3 + $0x20] sm:$0xff] %v406
          %423 = vst [vmem:[#allocation3 + $0x28] sm:$0xff] %v407
          %424 = vst [vmem:[#allocation3 + $0x30] sm:$0xff] %v408
          %425 = vst [vmem:[#allocation3 + $0x38] sm:$0xff] %v409
          %426 = vst [vmem:[#allocation3 + $0x40] sm:$0xff] %v410
          %427 = vst [vmem:[#allocation3 + $0x48] sm:$0xff] %v411
          %428 = vst [vmem:[#allocation3 + $0x50] sm:$0xff] %v412
          %429 = vst [vmem:[#allocation3 + $0x58] sm:$0xff] %v413
          %430 = vst [vmem:[#allocation3 + $0x60] sm:$0xff] %v414
          %431 = vst [vmem:[#allocation3 + $0x68] sm:$0xff] %v415
          %432 = vst [vmem:[#allocation3 + $0x70] sm:$0xff] %v416
          %433 = vst [vmem:[#allocation3 + $0x78] sm:$0xff] %v417
        $region48: #{self_attention_pooling.1} parent=39 // pred_fallthru
          _
        %v434 = vlaneseq
        %v435 = vand.u32 %v434, 127
        %v436 = vld [vmem:[%s287] sm:$0xff]
        %437 = vset.pattern.permute.xlu0 0
        %438 = vperm.xlu0 %437, %v436
        %v439 = vpop.permute.xlu0 %438
        %vm440 = vcmp.ge.s32.totalorder %v435, %v439
        %v441 = vld [vmem:[%s291] sm:$0xff]
        %442 = vset.pattern.permute.xlu0 0
        %443 = vperm.xlu0 %442, %v441
        %v444 = vpop.permute.xlu0 %443
        %vm445 = vcmp.le.s32.totalorder %v435, %v444
        %vm446 = vmand %vm440, %vm445
        %v447 = vld [vmem:[#allocation2] sm:$0x1]
        %v448 = vsub.f32 %v447, 1e+10
        %v450 = vlaneseq
        %v451 = vshrl.u32 %v450, 7
        %v452 = vsub.s32 0, %v451
        %v453 = vrot.slane %v447, %v452
        %v456 = vlaneseq
        %v457 = vshrl.u32 %v456, 7
        %v458 = vsub.s32 0, %v457
        %v459 = vrot.slane %v448, %v458
        %v461 = vsel %vm446, %v453, %v459
        %462 = vmax.xlane.f32.xlu0 %v461
        %v463 = vpop.xlane.xlu0 %462
        %v464 = vsub.f32 %v461, %v463
        %v465 = vmul.f32 %v464, 1.442695
        %v466 = vpow.pop %v465
        %467 = vadd.xlane.f32.xlu0 %v466
        %v468 = vpop.xlane.xlu0 %467
        %v469 = vrcp.pop %v468
        %v470 = vmul.f32 1.0, %v469
        %v471 = vmul.f32 %v466, %v470
        %v472 = vld [vmem:[#allocation3] sm:$0xff]
        %v473 = vld [vmem:[#allocation3 + $0x8] sm:$0xff]
        %v474 = vld [vmem:[#allocation3 + $0x10] sm:$0xff]
        %v475 = vld [vmem:[#allocation3 + $0x18] sm:$0xff]
        %v476 = vld [vmem:[#allocation3 + $0x20] sm:$0xff]
        %v477 = vld [vmem:[#allocation3 + $0x28] sm:$0xff]
        %v478 = vld [vmem:[#allocation3 + $0x30] sm:$0xff]
        %v479 = vld [vmem:[#allocation3 + $0x38] sm:$0xff]
        %v480 = vld [vmem:[#allocation3 + $0x40] sm:$0xff]
        %v481 = vld [vmem:[#allocation3 + $0x48] sm:$0xff]
        %v482 = vld [vmem:[#allocation3 + $0x50] sm:$0xff]
        %v483 = vld [vmem:[#allocation3 + $0x58] sm:$0xff]
        %v484 = vld [vmem:[#allocation3 + $0x60] sm:$0xff]
        %v485 = vld [vmem:[#allocation3 + $0x68] sm:$0xff]
        %v486 = vld [vmem:[#allocation3 + $0x70] sm:$0xff]
        %v487 = vld [vmem:[#allocation3 + $0x78] sm:$0xff]
        %488 = vmatprep.subr.mxu0 0.0
        %489 = vmatpush1.msra.mxu0 %v487
        %490 = vmatprep.subr.mxu0 0.0
        %491 = vmatpush1.msra.mxu0 %v486
        %492 = vmatprep.subr.mxu0 0.0
        %493 = vmatpush1.msra.mxu0 %v485
        %494 = vmatprep.subr.mxu0 0.0
        %495 = vmatpush1.msra.mxu0 %v484
        %496 = vmatprep.subr.mxu0 0.0
        %497 = vmatpush1.msra.mxu0 %v483
        %498 = vmatprep.subr.mxu0 0.0
        %499 = vmatpush1.msra.mxu0 %v482
        %500 = vmatprep.subr.mxu0 0.0
        %501 = vmatpush1.msra.mxu0 %v481
        %502 = vmatprep.subr.mxu0 0.0
        %503 = vmatpush1.msra.mxu0 %v480
        %504 = vmatprep.subr.mxu0 0.0
        %505 = vmatpush1.msra.mxu0 %v479
        %506 = vmatprep.subr.mxu0 0.0
        %507 = vmatpush1.msra.mxu0 %v478
        %508 = vmatprep.subr.mxu0 0.0
        %509 = vmatpush1.msra.mxu0 %v477
        %510 = vmatprep.subr.mxu0 0.0
        %511 = vmatpush1.msra.mxu0 %v476
        %512 = vmatprep.subr.mxu0 0.0
        %513 = vmatpush1.msra.mxu0 %v475
        %514 = vmatprep.subr.mxu0 0.0
        %515 = vmatpush1.msra.mxu0 %v474
        %516 = vmatprep.subr.mxu0 0.0
        %517 = vmatpush1.msra.mxu0 %v473
        %518 = vmatprep.subr.mxu0 0.0
        %519 = vmatpush1.msra.mxu0 %v472
        %520 = vmatprep.subr.mxu0 0.0
        %521 = vmatpush2.msra.mxu0 0.0
        %522 = vmatprep.subr.mxu0 0.0
        %523 = vmatpush2.msra.mxu0 0.0
        %524 = vmatprep.subr.mxu0 0.0
        %525 = vmatpush2.msra.mxu0 0.0
        %526 = vmatprep.subr.mxu0 0.0
        %527 = vmatpush2.msra.mxu0 0.0
        %528 = vmatprep.subr.mxu0 0.0
        %529 = vmatpush2.msra.mxu0 0.0
        %530 = vmatprep.subr.mxu0 0.0
        %531 = vmatpush2.msra.mxu0 0.0
        %532 = vmatprep.subr.mxu0 0.0
        %533 = vmatpush2.msra.mxu0 0.0
        %534 = vmatprep.subr.mxu0 0.0
        %535 = vmatpush2.msra.mxu0 0.0
        %536 = vmatprep.subr.mxu0 0.0
        %537 = vmatpush2.msra.mxu0 0.0
        %538 = vmatprep.subr.mxu0 0.0
        %539 = vmatpush2.msra.mxu0 0.0
        %540 = vmatprep.subr.mxu0 0.0
        %541 = vmatpush2.msra.mxu0 0.0
        %542 = vmatprep.subr.mxu0 0.0
        %543 = vmatpush2.msra.mxu0 0.0
        %544 = vmatprep.subr.mxu0 0.0
        %545 = vmatpush2.msra.mxu0 0.0
        %546 = vmatprep.subr.mxu0 0.0
        %547 = vmatpush2.msra.mxu0 0.0
        %548 = vmatprep.subr.mxu0 0.0
        %549 = vmatpush2.msra.mxu0 0.0
        %550 = vmatprep.subr.mxu0 0.0
        %551 = vmatpush2.msra.mxu0 0.0
        %552 = vmatprep.mubr.f32.mxu0 0.0
        %553 = vmatmul.mubr.f32.gmra.mxu0 %v471
        %v554 = vpop.f32.mrf.mxu0
        %v555 = vadd.f32 0.0, %v554
        %v556 = vpop.f32.mrf.mxu0
        %557 = vdwg.mxu0
        %558 = vst [vmem:[%s283] sm:$0xff] %v555
        %s559 = sand.u32 %s165, 1
        %s560 = scalar_lea.sflag [#allocation7], %s559
        %s561 = sand.u32 %s165, 1
        %s562 = smul.addr %s561, 8
        %s563 = scalar_lea.vmem [#allocation8], %s562
        // Predicated region
        $region49: #{self_attention_pooling.1} parent=39 // pred_check
          %p564 = pneg %p175
        $region50: #{self_attention_pooling.1} parent=39 // pred_check_branch
          %566 = sbr.rel (%p564) target = $region52
        $region51: #{self_attention_pooling.1} parent=39 // pred_region
          %s568 = ssub.s32 128, 128
          %569 = vsyncadd %s560, %s568
          %s570 = sadd.s32 %s28, %s27
          %s571 = smul.addr %s570, 128
          %s572 = scalar_lea.hbm %s5, %s571
          %s574 = sshll.u32 %s563, 4
          %s575 = int_to_ptr.vmem [resolvable:$true] %s574
          %577 = dma.vmem_to_hbm [thread:$0]  %s575, 128, %s572, %s560
        $region52: #{self_attention_pooling.1} parent=39 // pred_fallthru
          _
      $region40: #{self_attention_pooling.1} parent=5 // pred_fallthru
        _
      %p578 = scmp.le.s32.totalorder 2, %s18
      // Predicated region
      $region53: #{self_attention_pooling.1} parent=5 // pred_check
        %p579 = pneg %p578
      $region54: #{self_attention_pooling.1} parent=5 // pred_check_branch
        %581 = sbr.rel (%p579) target = $region56
      $region55: #{self_attention_pooling.1} parent=5 // pred_region
        %s582 = ssub.s32 %s18, 2
        // Predicated region
        $region57: #{self_attention_pooling.1} parent=55 // pred_check
          %p583 = pneg %p181
        $region58: #{self_attention_pooling.1} parent=55 // pred_check_branch
          %585 = sbr.rel (%p583) target = $region60
        $region59: #{self_attention_pooling.1} parent=55 // pred_region
          %s586 = sand.u32 %s166, 1
          %s587 = scalar_lea.sflag [#allocation7], %s586
          %s588 = sand.u32 %s166, 1
          %s589 = smul.addr %s588, 8
          %s590 = scalar_lea.vmem [#allocation8], %s589
          %591 = dma.done %s587, 128
        $region60: #{self_attention_pooling.1} parent=55 // pred_fallthru
          _
      $region56: #{self_attention_pooling.1} parent=5 // pred_fallthru
        _
    $region6: #{self_attention_pooling.1} parent=1 // loop_footer
      %s22 = sadd.s32 1, %s18
    $region7: #{self_attention_pooling.1} parent=1 // loop_footer_branch
      %17 = sbr.rel target = $region3
    $region8: #{self_attention_pooling.1} parent=1 // loop_exit
      _
    %592 = vsyncpa [#allocation6], 1
    %s593 = scalar_lea.sflag [#allocation6], 1
    %594 = vsyncpa %s593, 1
    %595 = vsyncpa [#allocation7], 1
    %s596 = scalar_lea.sflag [#allocation7], 1
    %597 = vsyncpa %s596, 1

</llo_original>
